<compile_context>
chip_gen: v7x
topology: tpu7x:2x2x1
jax: 0.10.0
libtpu: 0.0.40
codegen_flags: <defaults>
</compile_context>

<pallas_src>
import functools

import jax
import jax.numpy as jnp
from jax.experimental import pallas as pl
from jax.experimental.pallas import tpu as pltpu


def _pool_rows_kernel(x_ref, o_ref, *, k, cut_w, out_w, w_mode):
    """Pools one block of rows.

    x_ref: (TR, k*cut_w) -- row r of the k x k window of output-row i lives in
           lanes [r*cut_w, (r+1)*cut_w) of input row i.
    o_ref: (TR, out_w) when the W reduction is done in-kernel, else (TR, cut_w).
    """
    x = x_ref[...]

    # H-direction reduction: element-wise max of k contiguous lane chunks (VPU).
    hm = x[:, 0:cut_w]
    for r in range(1, k):
        hm = jnp.maximum(hm, x[:, r * cut_w:(r + 1) * cut_w])

    if w_mode == "stride":
        # W-direction reduction: max of k lane-strided slices.
        wm = hm[:, 0::k]
        for c in range(1, k):
            wm = jnp.maximum(wm, hm[:, c::k])
        o_ref[...] = wm
    elif w_mode == "reshape":
        # W-direction reduction: fold lanes into (out_w, k), reduce trailing k.
        o_ref[...] = jnp.max(hm.reshape(hm.shape[0], out_w, k), axis=-1)
    else:  # "none": W reduction is finished by a tiny XLA epilogue in the wrapper.
        o_ref[...] = hm


def _choose_block_rows(n_rows, row_bytes):
    """Rows per grid step: ~2 MiB input blocks, multiple-of-8 sublanes, >=2 steps."""
    target_bytes = 2 * 1024 * 1024
    tr = max(8, (target_bytes // max(row_bytes, 1)) // 8 * 8)
    tr = min(tr, n_rows)
    if n_rows >= 16:
        # Keep at least two grid steps so v7x can shard across its 2 TensorCores.
        tr = min(tr, max(8, (pl.cdiv(n_rows, 2) // 8) * 8))
    if tr % 8 != 0:
        # Tiny inputs: a single full-extent block is always a legal block shape.
        tr = n_rows
    return tr


def _build_pool_call(n_rows, cut_w, out_w, k, dtype, block_rows, w_mode):
    out_cols = out_w if w_mode != "none" else cut_w
    kernel = functools.partial(
        _pool_rows_kernel, k=k, cut_w=cut_w, out_w=out_w, w_mode=w_mode)
    return pl.pallas_call(
        kernel,
        out_shape=jax.ShapeDtypeStruct((n_rows, out_cols), dtype),
        grid=(pl.cdiv(n_rows, block_rows),),
        in_specs=[pl.BlockSpec((block_rows, k * cut_w), lambda i: (i, 0))],
        out_specs=pl.BlockSpec((block_rows, out_cols), lambda i: (i, 0)),
        compiler_params=pltpu.CompilerParams(
            dimension_semantics=("parallel",),
            # Blocks are ~2 MiB each (double-buffered) -> fits v5e/v6e and
            # v7x's smaller 64 MiB physical VMEM with plenty of headroom.
            vmem_limit_bytes=32 * 1024 * 1024,
        ),
    )


@functools.lru_cache(maxsize=None)
def _get_pool_fn(n_rows, cut_w, out_w, k, dtype_name, block_rows):
    """Pick the most in-kernel variant that the current Mosaic build can lower."""
    dtype = jnp.dtype(dtype_name)
    arg = jax.ShapeDtypeStruct((n_rows, k * cut_w), dtype)
    for w_mode in ("stride", "reshape"):
        fn = _build_pool_call(n_rows, cut_w, out_w, k, dtype, block_rows, w_mode)
        try:
            jax.jit(fn).lower(arg).compile()
            return fn, True  # full k x k reduction happens inside the kernel
        except Exception:
            continue
    # Guaranteed-to-lower variant: H reduce in kernel, trailing-k max in XLA.
    return _build_pool_call(n_rows, cut_w, out_w, k, dtype, block_rows, "none"), False


def max_pooling(feature_map, kernel_size):
    """Forward pass of the PyTorch MaxPooling module.

    feature_map: (B, C, H, W) -> (B, C, H // k, W // k), stride == kernel_size,
    floor-cropping any remainder rows/columns (same as the reference module).
    """
    B, C, H, W = feature_map.shape
    k = int(kernel_size)
    out_h, out_w = H // k, W // k
    cut_h, cut_w = out_h * k, out_w * k

    # Degenerate shapes: nothing to pool (guard before building a 0-sized grid).
    if B * C == 0 or out_h == 0 or out_w == 0:
        return jnp.zeros((B, C, out_h, out_w), feature_map.dtype)

    x = feature_map
    if cut_h != H or cut_w != W:
        # Floor-crop; only materializes a copy when H or W is not a multiple of k.
        x = x[:, :, :cut_h, :cut_w]

    # Metadata-only reshape (no HBM transpose): one row per (image, output-row);
    # the k input rows of that window are k contiguous lane chunks of length cut_w.
    n_rows = B * C * out_h
    xr = x.reshape(n_rows, k * cut_w)

    itemsize = jnp.dtype(x.dtype).itemsize
    block_rows = _choose_block_rows(n_rows, k * cut_w * itemsize)

    fn, w_in_kernel = _get_pool_fn(n_rows, cut_w, out_w, k, str(x.dtype), block_rows)
    out = fn(xr)
    if w_in_kernel:
        return out.reshape(B, C, out_h, out_w)
    # Fallback epilogue: finish the W-direction reduction over the trailing k.
    return out.reshape(B, C, out_h, out_w, k).max(axis=-1)


def _reference_maxpool(feature_map, kernel_size):
    """Pure-JAX reference for correctness checking."""
    B, C, H, W = feature_map.shape
    k = kernel_size
    oh, ow = H // k, W // k
    x = feature_map[:, :, : oh * k, : ow * k]
    x = x.reshape(B, C, oh, k, ow, k)
    return jnp.max(x, axis=(3, 5))


if __name__ == "__main__":
    key = jax.random.PRNGKey(0)
    B, C, H, W = 2, 4, 16, 16
    kernel_size = 2
    x = jax.random.normal(key, (B, C, H, W), dtype=jnp.float32)

    out = jax.block_until_ready(max_pooling(x, kernel_size))
    ref = _reference_maxpool(x, kernel_size)
    assert out.shape == (B, C, H // kernel_size, W // kernel_size), out.shape
    assert jnp.allclose(out, ref), "Pallas max-pool mismatch vs reference"

    # Odd-shaped case exercising the floor-crop path (k=3, W % k != 0).
    x2 = jax.random.normal(jax.random.PRNGKey(1), (1, 2, 9, 7), dtype=jnp.float32)
    out2 = jax.block_until_ready(max_pooling(x2, 3))
    ref2 = _reference_maxpool(x2, 3)
    assert out2.shape == (1, 2, 3, 2), out2.shape
    assert jnp.allclose(out2, ref2), "Pallas max-pool mismatch vs reference (crop)"

    print("KERNEL_OK")
</pallas_src>

<mosaic_0001>
module attributes {stable_mosaic.version = 11 : i64} {
  func.func @_pool_rows_kernel(%arg0: i32, %arg1: memref<32x32xf32, #tpu.memory_space<vmem>>, %arg2: memref<32x16xf32, #tpu.memory_space<vmem>>) attributes {dimension_semantics = [#tpu.dimension_semantics<parallel>], iteration_bounds = array<i64: 2>, scalar_prefetch = 0 : i64, scratch_operands = 0 : i64, tpu.core_type = #tpu.core_type<tc>, window_params = [{transform_indices = @transform_0, window_bounds = array<i64: 32, 32>}, {transform_indices = @transform_1, window_bounds = array<i64: 32, 16>}]} {
    %c0 = arith.constant 0 : index
    %c0_0 = arith.constant 0 : index
    %0 = vector.load %arg1[%c0, %c0_0] : memref<32x32xf32, #tpu.memory_space<vmem>>, vector<32x32xf32>
    %1 = vector.extract_strided_slice %0 {offsets = [0, 0], sizes = [32, 16], strides = [1, 1]} : vector<32x32xf32> to vector<32x16xf32>
    %2 = vector.extract_strided_slice %0 {offsets = [0, 16], sizes = [32, 16], strides = [1, 1]} : vector<32x32xf32> to vector<32x16xf32>
    %3 = arith.maximumf %1, %2 : vector<32x16xf32>
    %c0_1 = arith.constant 0 : index
    %c0_2 = arith.constant 0 : index
    %4 = vector.load %arg2[%c0_1, %c0_2] : memref<32x16xf32, #tpu.memory_space<vmem>>, vector<32x16xf32>
    tpu.vector_store %arg2[%c0_1, %c0_2], %3 {strides = array<i32>} : memref<32x16xf32, #tpu.memory_space<vmem>>, vector<32x16xf32>,
    return
  }
  func.func @transform_0(%arg0: i32) -> (i32, i32) {
    %c0_i32 = arith.constant 0 : i32
    %c0_i32_0 = arith.constant 0 : i32
    return %arg0, %c0_i32 : i32, i32
  }
  func.func @transform_1(%arg0: i32) -> (i32, i32) {
    %c0_i32 = arith.constant 0 : i32
    %c0_i32_0 = arith.constant 0 : i32
    return %arg0, %c0_i32 : i32, i32
  }
}

</mosaic_0001>

<llo_original>
// kernel: tpu_custom_call.1
$region0: #{tpu_custom_call.1}
  #allocation0 [shape = 'u32[]', space=smem, size = 0x4, offset = 0x4, fixed_abs, tag = 'smem constant byte address 0x4 - core index']
  #allocation1 [shape = 'u32[144,128]{1,0:T(1,128)}', space=vmem, size = 0x12000, scoped, tag = 'internal scratch']
  %s0 = inlined_call_operand.vmem [shape: f32[64,32], index: 0, kind: input, shape index: {}]
  %s1 = inlined_call_operand.vmem [shape: f32[64,16], index: 1, kind: output, shape index: {}]
  %s2 = sld [smem:[#allocation0]]
  $region37: #{tpu_custom_call.1} parent=0
    _
  %s4 = ssub.s32 1, %s2
  %s5 = scalar_select 0, %s4, %s2
  loop: start=0, step=1, limit=4
  $region2: #{tpu_custom_call.1} parent=0 // loop_pre_header
    _
  $region3: #{tpu_custom_call.1} parent=0 // loop_header
    %s7 = sphi 0, %s11
    %p8 = scmp.ge.s32.totalorder %s7, 4
    %s17 = sphi 0, %s19
    %s20 = sphi 0, %s17
    %s21 = sphi 0, %s20
    %s37 = sphi 0, %s21
    %s43 = sphi 0, %s45
    %s46 = sphi 0, %s43
    %s47 = sphi 0, %s46
    %s63 = sphi 0, %s47
  $region4: #{tpu_custom_call.1} parent=0 // loop_header_branch
    %10 = sbr.rel (%p8) target = $region8
  $region5: #{tpu_custom_call.1} parent=0 // loop_body
    %s12 = ssub.s32 %s7, 1
    %s13 = ssub.s32 %s7, 2
    %s14 = sadd.s32 %s7, 1
    %s15 = ssub.s32 %s7, %s14
    %p16 = scmp.eq.s32.totalorder %s15, 0
    %s18 = sadd.s32 %s17, 1
    %s19 = scalar_select %p16, %s17, %s18
    %p22 = pneg %p16
    %p23 = scmp.eq.s32.totalorder %s7, 1
    %p24 = por %p22, %p23
    %p25 = scmp.ne.s32.totalorder %s17, %s20
    %p26 = scmp.eq.s32.totalorder %s7, 0
    %p27 = por %p25, %p26
    %p28 = scmp.ne.s32.totalorder %s17, %s20
    %p29 = scmp.eq.s32.totalorder %s12, 1
    %p30 = por %p28, %p29
    %p31 = scmp.ne.s32.totalorder %s20, %s21
    %p32 = scmp.eq.s32.totalorder %s12, 0
    %p33 = por %p31, %p32
    %p34 = scmp.ne.s32.totalorder %s20, %s21
    %p35 = scmp.eq.s32.totalorder %s13, 1
    %p36 = por %p34, %p35
    %p38 = scmp.ne.s32.totalorder %s21, %s37
    %p39 = scmp.eq.s32.totalorder %s13, 0
    %p40 = por %p38, %p39
    %s41 = ssub.s32 %s7, %s14
    %p42 = scmp.eq.s32.totalorder %s41, 0
    %s44 = sadd.s32 %s43, 1
    %s45 = scalar_select %p42, %s43, %s44
    %p48 = pneg %p42
    %p49 = scmp.eq.s32.totalorder %s7, 1
    %p50 = por %p48, %p49
    %p51 = scmp.ne.s32.totalorder %s43, %s46
    %p52 = scmp.eq.s32.totalorder %s7, 0
    %p53 = por %p51, %p52
    %p54 = scmp.ne.s32.totalorder %s43, %s46
    %p55 = scmp.eq.s32.totalorder %s12, 1
    %p56 = por %p54, %p55
    %p57 = scmp.ne.s32.totalorder %s46, %s47
    %p58 = scmp.eq.s32.totalorder %s12, 0
    %p59 = por %p57, %p58
    %p60 = scmp.ne.s32.totalorder %s46, %s47
    %p61 = scmp.eq.s32.totalorder %s13, 1
    %p62 = por %p60, %p61
    %p64 = scmp.ne.s32.totalorder %s47, %s63
    %p65 = scmp.eq.s32.totalorder %s13, 0
    %p66 = por %p64, %p65
    %p67 = scmp.le.s32.totalorder 1, %s7
    %p68 = scmp.lt.s32.totalorder %s7, 3
    %p69 = pnand %p67, %p68
    %p70 = pneg %p69
    // Predicated region
    $region9: #{tpu_custom_call.1} parent=5 // pred_check
      _
    $region10: #{tpu_custom_call.1} parent=5 // pred_check_branch
      %72 = sbr.rel (%p69) target = $region12
    $region11: #{tpu_custom_call.1} parent=5 // pred_region
      %s73 = ssub.s32 %s7, 1
    $region12: #{tpu_custom_call.1} parent=5 // pred_fallthru
      _
    %p74 = scmp.lt.s32.totalorder %s7, 2
    // Predicated region
    $region13: #{tpu_custom_call.1} parent=5 // pred_check
      %p75 = pneg %p74
    $region14: #{tpu_custom_call.1} parent=5 // pred_check_branch
      %77 = sbr.rel (%p75) target = $region16
    $region15: #{tpu_custom_call.1} parent=5 // pred_region
      // Predicated region
      $region17: #{tpu_custom_call.1} parent=15 // pred_check
        %p78 = pneg %p27
      $region18: #{tpu_custom_call.1} parent=15 // pred_check_branch
        %80 = sbr.rel (%p78) target = $region20
      $region19: #{tpu_custom_call.1} parent=15 // pred_region
        %s81 = smul.u32 4, %s7
        %p82 = scmp.lt.s32.totalorder %s81, 7
        %s83 = scalar_select %p82, %s81, 7
        %s84 = smul.addr %s83, 8
        %s85 = scalar_lea.vmem %s0, %s84
        %s86 = smul.u32 4, %s7
      $region20: #{tpu_custom_call.1} parent=15 // pred_fallthru
        _
    $region16: #{tpu_custom_call.1} parent=5 // pred_fallthru
      _
    %p87 = scmp.le.s32.totalorder 1, %s7
    %p88 = scmp.lt.s32.totalorder %s7, 3
    %p89 = pnand %p87, %p88
    %p90 = pneg %p89
    // Predicated region
    $region21: #{tpu_custom_call.1} parent=5 // pred_check
      _
    $region22: #{tpu_custom_call.1} parent=5 // pred_check_branch
      %92 = sbr.rel (%p89) target = $region24
    $region23: #{tpu_custom_call.1} parent=5 // pred_region
      %s93 = ssub.s32 %s7, 1
      %s94 = smul.u32 4, %s12
      %p95 = scmp.lt.s32.totalorder %s94, 7
      %s96 = scalar_select %p95, %s94, 7
      %s97 = smul.addr %s96, 8
      %s98 = scalar_lea.vmem %s0, %s97
      %p99 = pneg %p33
      %p100 = pneg %p30
      %p101 = pneg %p59
      %p102 = pneg %p56
      %s103 = smul.u32 4, %s12
      %p104 = scmp.lt.s32.totalorder %s103, 7
      %s105 = scalar_select %p104, %s103, 7
      %s106 = smul.addr %s105, 8
      %s107 = scalar_lea.vmem %s1, %s106
      %s108 = smul.u32 4, %s12
      %p109 = scmp.lt.s32.totalorder %s108, 7
      %s110 = scalar_select %p109, %s108, 7
      %s111 = smul.addr %s110, 8
      %s112 = scalar_lea.vmem %s0, %s111
      %s113 = smul.u32 4, %s12
      %s114 = smul.u32 4, %s12
      %p115 = scmp.lt.s32.totalorder %s114, 7
      %s116 = scalar_select %p115, %s114, 7
      %s117 = smul.addr %s116, 8
      %s118 = scalar_lea.vmem %s1, %s117
      %s119 = smul.u32 4, %s12
      %v120 = vld [vmem:[%s112] sm:$0xff]
      %v121 = vld [vmem:[%s112 + $0x8] sm:$0xff]
      %v122 = vld [vmem:[%s112 + $0x10] sm:$0xff]
      %v123 = vld [vmem:[%s112 + $0x18] sm:$0xff]
      %128 = vrot.lane.b32.xlu0 %v120, 112
      %v129 = vpop.permute.xlu0 %128
      %130 = vrot.lane.b32.xlu0 %v121, 112
      %v131 = vpop.permute.xlu0 %130
      %132 = vrot.lane.b32.xlu0 %v122, 112
      %v133 = vpop.permute.xlu0 %132
      %134 = vrot.lane.b32.xlu0 %v123, 112
      %v135 = vpop.permute.xlu0 %134
      %v140 = vmax.f32 %v120, %v129
      %v141 = vmax.f32 %v121, %v131
      %v142 = vmax.f32 %v122, %v133
      %v143 = vmax.f32 %v123, %v135
      %vm144 = vcmask 130048
      %145 = vst.msk [vmem:[%s118] sm:$0xff] %vm144, %v140
      %146 = vst.msk [vmem:[%s118 + $0x8] sm:$0xff] %vm144, %v141
      %147 = vst.msk [vmem:[%s118 + $0x10] sm:$0xff] %vm144, %v142
      %148 = vst.msk [vmem:[%s118 + $0x18] sm:$0xff] %vm144, %v143
      %s149 = smul.u32 4, %s12
      %p150 = scmp.lt.s32.totalorder %s149, 7
      %s151 = scalar_select %p150, %s149, 7
      %s152 = smul.addr %s151, 8
      %s153 = scalar_lea.vmem %s1, %s152
      // Predicated region
      $region25: #{tpu_custom_call.1} parent=23 // pred_check
        %p154 = pneg %p56
      $region26: #{tpu_custom_call.1} parent=23 // pred_check_branch
        %156 = sbr.rel (%p154) target = $region28
      $region27: #{tpu_custom_call.1} parent=23 // pred_region
        %s157 = smul.u32 4, %s12
      $region28: #{tpu_custom_call.1} parent=23 // pred_fallthru
        _
    $region24: #{tpu_custom_call.1} parent=5 // pred_fallthru
      _
    %p158 = scmp.le.s32.totalorder 2, %s7
    // Predicated region
    $region29: #{tpu_custom_call.1} parent=5 // pred_check
      %p159 = pneg %p158
    $region30: #{tpu_custom_call.1} parent=5 // pred_check_branch
      %161 = sbr.rel (%p159) target = $region32
    $region31: #{tpu_custom_call.1} parent=5 // pred_region
      %s162 = ssub.s32 %s7, 2
      // Predicated region
      $region33: #{tpu_custom_call.1} parent=31 // pred_check
        %p163 = pneg %p62
      $region34: #{tpu_custom_call.1} parent=31 // pred_check_branch
        %165 = sbr.rel (%p163) target = $region36
      $region35: #{tpu_custom_call.1} parent=31 // pred_region
        %s166 = smul.u32 4, %s13
        %p167 = scmp.lt.s32.totalorder %s166, 7
        %s168 = scalar_select %p167, %s166, 7
        %s169 = smul.addr %s168, 8
        %s170 = scalar_lea.vmem %s1, %s169
      $region36: #{tpu_custom_call.1} parent=31 // pred_fallthru
        _
    $region32: #{tpu_custom_call.1} parent=5 // pred_fallthru
      _
  $region6: #{tpu_custom_call.1} parent=0 // loop_footer
    %s11 = sadd.s32 1, %s7
  $region7: #{tpu_custom_call.1} parent=0 // loop_footer_branch
    %6 = sbr.rel target = $region3
  $region8: #{tpu_custom_call.1} parent=0 // loop_exit
    _

</llo_original>
